<compile_context>
chip_gen: v7x
topology: tpu7x:2x2x1
jax: 0.10.0
libtpu: 0.0.40
codegen_flags: <defaults>
</compile_context>

<pallas_src>
import math

import jax
import jax.numpy as jnp
from jax.experimental import pallas as pl
from jax.experimental.pallas import tpu as pltpu


def _round_up(x, m):
    return ((x + m - 1) // m) * m


# ---------------------------------------------------------------------------
# Hardware hints (per-generation tuning; conservative fallbacks)
# ---------------------------------------------------------------------------
def _hw_hints():
    kind = ""
    try:
        kind = (jax.devices()[0].device_kind or "").lower()
    except Exception:
        pass
    is_v7 = "v7" in kind
    bf16_compute = ("v6" in kind) or is_v7          # bf16 VPU/EUP on v6e/v7x
    return {
        "tile_bytes": (4 << 20) if is_v7 else (8 << 20),   # 64 vs 128 MiB VMEM
        "steps_target": 8 if is_v7 else 4,                  # >=4 steps per TC
        "bf16_compute": bf16_compute,
        "vmem_cap": (48 << 20) if is_v7 else (100 << 20),
    }


# ---------------------------------------------------------------------------
# Pallas kernel factory: elementwise hot path (scale -> tanh -> scale -> bias)
# ---------------------------------------------------------------------------
def _make_dyt_kernel(with_bias, compute_dtype):
    if with_bias:
        def kernel(alpha_ref, w_ref, b_ref, x_ref, o_ref):
            # alpha_ref: SMEM (1,) f32 ; w_ref/b_ref: VMEM (1, W) compute dtype
            # x_ref/o_ref: VMEM (tm, W)
            alpha = alpha_ref[0].astype(compute_dtype)
            x = x_ref[...].astype(compute_dtype)        # no-op on native path
            y = w_ref[...] * jnp.tanh(alpha * x) + b_ref[...]
            o_ref[...] = y.astype(o_ref.dtype)
    else:
        def kernel(alpha_ref, w_ref, x_ref, o_ref):
            alpha = alpha_ref[0].astype(compute_dtype)
            x = x_ref[...].astype(compute_dtype)
            y = w_ref[...] * jnp.tanh(alpha * x)
            o_ref[...] = y.astype(o_ref.dtype)
    return kernel


# ---------------------------------------------------------------------------
# Wrapper: flatten leading dims, lane-widen, VMEM-budgeted row tiles, no pad
# ---------------------------------------------------------------------------
def dynamic_tanh(x, alpha, weight, beta=None, *, compute_dtype=None,
                 donate_x=False, block_rows=None):
    """Pallas implementation of DynamicTanh.forward.

    x      : [..., hidden]
    alpha  : scalar parameter (shape (1,))
    weight : [hidden]
    beta   : [hidden] or None (config.dyt_bias)
    compute_dtype : override compute precision (default: native bf16/fp16 on
                    v6e/v7x, f32 otherwise)
    donate_x      : alias the input HBM buffer to the output (caller donates x)
    block_rows    : override the row-tile size (testing / tuning)
    """
    orig_shape = x.shape
    hidden = int(orig_shape[-1])
    tokens = 1
    for d in orig_shape[:-1]:
        tokens *= int(d)
    x2d = x.reshape(tokens, hidden)
    itemsize = jnp.dtype(x.dtype).itemsize

    hints = _hw_hints()

    if compute_dtype is None:
        if hints["bf16_compute"] and (x.dtype == jnp.bfloat16
                                      or x.dtype == jnp.float16):
            compute_dtype = x.dtype          # native VPU/EUP path (v6e/v7x)
        else:
            compute_dtype = jnp.float32

    # --- lane-dense widening for small / non-128-multiple hidden -----------
    # Only widen when (a) a single wide row stays modest and (b) tokens is an
    # exact multiple of the widening factor, so no padding is ever needed.
    k = 1
    if hidden % 128 != 0:
        kk = 128 // math.gcd(hidden, 128)
        if hidden * kk * itemsize <= (1 << 20) and tokens % kk == 0:
            k = kk
    W = hidden * k
    rows = tokens // k

    # --- row-tile sizing from a per-generation VMEM budget ------------------
    row_bytes = W * itemsize
    tm = max(8, (hints["tile_bytes"] // row_bytes) // 8 * 8)

    # Keep >= steps_target grid steps (pipeline depth / 2-TC balance on v7x),
    # but never shrink a tile below ~1 MiB.
    floor_rows = max(8, ((1 << 20) // row_bytes) // 8 * 8)
    cand = _round_up(pl.cdiv(rows, hints["steps_target"]), 8)
    if cand >= floor_rows:
        tm = min(tm, cand)

    if block_rows is not None:
        tm = _round_up(int(block_rows), 8)
    # tm is a multiple of 8, or (after this cap) equal to the full row count —
    # either satisfies the (8,128) BlockSpec constraint.
    tm = min(tm, rows)

    grid = (pl.cdiv(rows, tm),)
    # NOTE: if rows % tm != 0 the tail block reads unspecified values past the
    # array (tanh is bounded, no Inf/NaN blow-up) and its OOB writes are
    # dropped by Pallas, so the output is never contaminated.

    # --- parameters (pre-cast once, outside the kernel loop) ----------------
    alpha_arr = jnp.asarray(alpha, jnp.float32).reshape(1)
    w_flat = jnp.asarray(weight, compute_dtype).reshape(-1)
    w_row = (jnp.tile(w_flat, k) if k > 1 else w_flat).reshape(1, W)

    xw = x2d.reshape(rows, W) if k > 1 else x2d

    tile_bytes = tm * W * itemsize
    comp_itemsize = jnp.dtype(compute_dtype).itemsize
    # double-buffered in + out tiles + broadcast rows + slack
    vmem_limit = 4 * tile_bytes + 8 * W * comp_itemsize + (2 << 20)
    vmem_limit = int(min(vmem_limit, hints["vmem_cap"]))

    smem_spec = pl.BlockSpec(memory_space=pltpu.MemorySpace.SMEM)
    row_spec = pl.BlockSpec((1, W), lambda i: (0, 0))
    tile_spec = pl.BlockSpec((tm, W), lambda i: (i, 0))
    cparams = pltpu.CompilerParams(
        dimension_semantics=("parallel",),
        vmem_limit_bytes=vmem_limit,
    )

    with_bias = beta is not None
    kernel = _make_dyt_kernel(with_bias, compute_dtype)

    if with_bias:
        b_flat = jnp.asarray(beta, compute_dtype).reshape(-1)
        b_row = (jnp.tile(b_flat, k) if k > 1 else b_flat).reshape(1, W)
        operands = (alpha_arr, w_row, b_row, xw)
        in_specs = [smem_spec, row_spec, row_spec, tile_spec]
        x_idx = 3
    else:
        operands = (alpha_arr, w_row, xw)
        in_specs = [smem_spec, row_spec, tile_spec]
        x_idx = 2

    io_alias = {x_idx: 0} if donate_x else {}

    out = pl.pallas_call(
        kernel,
        out_shape=jax.ShapeDtypeStruct((rows, W), x.dtype),
        grid=grid,
        in_specs=in_specs,
        out_specs=tile_spec,
        compiler_params=cparams,
        input_output_aliases=io_alias,
    )(*operands)

    return out.reshape(orig_shape)


# ---------------------------------------------------------------------------
# Deterministic parameter init (mirrors DynamicTanh.reset_parameters)
# ---------------------------------------------------------------------------
def init_dynamic_tanh_params(hidden_size, *, dyt_alpha_init=0.5,
                             dyt_bias=True, init_value=None):
    alpha = jnp.full((1,), dyt_alpha_init, jnp.float32)
    if init_value is None:
        weight = jnp.ones((hidden_size,), jnp.float32)
    else:
        weight = jnp.full((hidden_size,), init_value, jnp.float32)
    beta = jnp.zeros((hidden_size,), jnp.float32) if dyt_bias else None
    return alpha, weight, beta


if __name__ == "__main__":
    key = jax.random.PRNGKey(0)
    k1, k2, k3 = jax.random.split(key, 3)

    # Test 1: bias path, Megatron activation layout [seq, batch, hidden];
    #         hidden=32 exercises the lane-widening (k=4 -> W=128) path.
    seq, batch, hidden = 8, 2, 32
    x = jax.random.normal(k1, (seq, batch, hidden), jnp.float32)
    alpha, weight, beta = init_dynamic_tanh_params(
        hidden, dyt_alpha_init=0.5, dyt_bias=True, init_value=None)
    weight = weight * (1.0 + 0.01 * jnp.arange(hidden, dtype=jnp.float32))
    beta = beta + 0.1
    out = dynamic_tanh(x, alpha, weight, beta)
    jax.block_until_ready(out)
    ref = weight * jnp.tanh(alpha[0] * x) + beta
    assert out.shape == x.shape
    assert jnp.allclose(out, ref, atol=1e-5, rtol=1e-5), "mismatch (bias path)"

    # Test 2: no-bias path, tokens (15) not divisible by the widening factor
    #         -> k=1 fallback (narrow lanes, still correct, no padding).
    x2 = jax.random.normal(k2, (5, 3, hidden), jnp.float32)
    alpha2, weight2, _ = init_dynamic_tanh_params(
        hidden, dyt_alpha_init=1.5, dyt_bias=False, init_value=None)
    out2 = dynamic_tanh(x2, alpha2, weight2, None)
    jax.block_until_ready(out2)
    ref2 = weight2 * jnp.tanh(alpha2[0] * x2)
    assert out2.shape == x2.shape
    assert jnp.allclose(out2, ref2, atol=1e-5, rtol=1e-5), "mismatch (no-bias)"

    # Test 3: partial tail block (rows=28, tm=8 -> last block OOB rows dropped)
    #         with a bf16 input (native-dtype compute on v6e/v7x, f32 on v5e).
    hidden3 = 128
    x3 = jax.random.normal(k3, (28, hidden3), jnp.float32).astype(jnp.bfloat16)
    alpha3, weight3, beta3 = init_dynamic_tanh_params(
        hidden3, dyt_alpha_init=0.75, dyt_bias=True, init_value=None)
    weight3 = weight3 * (1.0 + 0.005 * jnp.arange(hidden3, dtype=jnp.float32))
    beta3 = beta3 - 0.05
    out3 = dynamic_tanh(x3, alpha3, weight3, beta3, block_rows=8)
    jax.block_until_ready(out3)
    ref3 = (weight3 * jnp.tanh(alpha3[0] * x3.astype(jnp.float32))
            + beta3).astype(jnp.bfloat16)
    assert out3.shape == x3.shape
    assert jnp.allclose(out3.astype(jnp.float32), ref3.astype(jnp.float32),
                        atol=3e-2, rtol=3e-2), "mismatch (bf16 tail-block path)"

    print("KERNEL_OK")
</pallas_src>

<mosaic_0001>
module attributes {stable_mosaic.version = 11 : i64} {
  func.func @kernel(%arg0: i32, %arg1: memref<1xf32, #tpu.memory_space<smem>>, %arg2: memref<1x128xf32, #tpu.memory_space<vmem>>, %arg3: memref<1x128xf32, #tpu.memory_space<vmem>>, %arg4: memref<4x128xf32, #tpu.memory_space<vmem>>, %arg5: memref<4x128xf32, #tpu.memory_space<vmem>>) attributes {dimension_semantics = [#tpu.dimension_semantics<parallel>], iteration_bounds = array<i64: 1>, scalar_prefetch = 0 : i64, scratch_operands = 0 : i64, tpu.core_type = #tpu.core_type<tc>, window_params = [{transform_indices = @transform_0, window_bounds = array<i64: 1>}, {pipeline_mode = #tpu.pipeline_mode<synchronous>, transform_indices = @transform_1, window_bounds = array<i64: 1, 128>}, {pipeline_mode = #tpu.pipeline_mode<synchronous>, transform_indices = @transform_2, window_bounds = array<i64: 1, 128>}, {transform_indices = @transform_3, window_bounds = array<i64: 4, 128>}, {transform_indices = @transform_4, window_bounds = array<i64: 4, 128>}]} {
    %c0 = arith.constant 0 : index
    %0 = memref.load %arg1[%c0] : memref<1xf32, #tpu.memory_space<smem>>
    %c0_0 = arith.constant 0 : index
    %c0_1 = arith.constant 0 : index
    %1 = vector.load %arg4[%c0_0, %c0_1] : memref<4x128xf32, #tpu.memory_space<vmem>>, vector<4x128xf32>
    %c0_2 = arith.constant 0 : index
    %c0_3 = arith.constant 0 : index
    %2 = vector.load %arg2[%c0_2, %c0_3] : memref<1x128xf32, #tpu.memory_space<vmem>>, vector<1x128xf32>
    %3 = vector.broadcast %0 : f32 to vector<4x128xf32>
    %4 = arith.mulf %3, %1 : vector<4x128xf32>
    %5 = math.tanh %4 : vector<4x128xf32>
    %6 = vector.broadcast %2 : vector<1x128xf32> to vector<4x128xf32>
    %7 = arith.mulf %6, %5 : vector<4x128xf32>
    %c0_4 = arith.constant 0 : index
    %c0_5 = arith.constant 0 : index
    %8 = vector.load %arg3[%c0_4, %c0_5] : memref<1x128xf32, #tpu.memory_space<vmem>>, vector<1x128xf32>
    %9 = vector.broadcast %8 : vector<1x128xf32> to vector<4x128xf32>
    %10 = arith.addf %7, %9 : vector<4x128xf32>
    %c0_6 = arith.constant 0 : index
    %c0_7 = arith.constant 0 : index
    %11 = vector.load %arg5[%c0_6, %c0_7] : memref<4x128xf32, #tpu.memory_space<vmem>>, vector<4x128xf32>
    tpu.vector_store %arg5[%c0_6, %c0_7], %10 {strides = array<i32>} : memref<4x128xf32, #tpu.memory_space<vmem>>, vector<4x128xf32>,
    return
  }
  func.func @transform_0(%arg0: i32) -> i32 {
    %c0_i32 = arith.constant 0 : i32
    %c0_i32_0 = arith.constant 0 : i32
    return %c0_i32 : i32
  }
  func.func @transform_1(%arg0: i32) -> (i32, i32) {
    %c0_i32 = arith.constant 0 : i32
    %c0_i32_0 = arith.constant 0 : i32
    %c0_i32_1 = arith.constant 0 : i32
    return %c0_i32, %c0_i32_0 : i32, i32
  }
  func.func @transform_2(%arg0: i32) -> (i32, i32) {
    %c0_i32 = arith.constant 0 : i32
    %c0_i32_0 = arith.constant 0 : i32
    %c0_i32_1 = arith.constant 0 : i32
    return %c0_i32, %c0_i32_0 : i32, i32
  }
  func.func @transform_3(%arg0: i32) -> (i32, i32) {
    %c0_i32 = arith.constant 0 : i32
    %c0_i32_0 = arith.constant 0 : i32
    return %arg0, %c0_i32 : i32, i32
  }
  func.func @transform_4(%arg0: i32) -> (i32, i32) {
    %c0_i32 = arith.constant 0 : i32
    %c0_i32_0 = arith.constant 0 : i32
    return %arg0, %c0_i32 : i32, i32
  }
}

</mosaic_0001>

<llo_original>
// kernel: tpu_custom_call.1
$region0: #{tpu_custom_call.1}
  #allocation0 [shape = 'u32[]', space=smem, size = 0x4, offset = 0x4, fixed_abs, tag = 'smem constant byte address 0x4 - core index']
  #allocation1 [shape = 'u32[144,128]{1,0:T(1,128)}', space=vmem, size = 0x12000, scoped, tag = 'internal scratch']
  #allocation2 [shape = 'f32[1]{0:T(128)S(6)}', space=smem, size = 0x200, scoped, tag = 'scoped memory for tpu_custom_call.1']
  %s0 = inlined_call_operand.<no memory space> [shape: f32[1], index: 0, kind: input, shape index: {}]
  %s1 = inlined_call_operand.vmem [shape: f32[1,128], index: 1, kind: input, shape index: {}]
  %s2 = inlined_call_operand.vmem [shape: f32[1,128], index: 2, kind: input, shape index: {}]
  %s3 = inlined_call_operand.vmem [shape: f32[4,128], index: 3, kind: input, shape index: {}]
  %s4 = inlined_call_operand.hbm [shape: f32[4,128], index: 4, kind: output, shape index: {}]
  %s5 = sld [smem:[#allocation0]]
  $region26: #{tpu_custom_call.1} parent=0
    _
  %s7 = ssub.s32 1, %s5
  %s8 = scalar_select 0, %s7, %s5
  %9 = sst [smem:[#allocation2]] %s0
  $region1: #{tpu_custom_call.1} parent=0
    #allocation3 [shape = 'u8[2048]{0}', space=vmem, size = 0x800, scoped, tag = 'output window, operand 0, single buffered']
    #allocation4 [shape = 's32[1]{0}', space=sflag, size = 0x4, scoped, tag = 'scoped memory for tpu_custom_call.1']
    %10 = vsyncpa [#allocation4], 0
    // Predicated region
    $region2: #{tpu_custom_call.1} parent=1 // pred_check
      _
    $region3: #{tpu_custom_call.1} parent=1 // pred_check_branch
      %12 = sbr.rel (0) target = $region5
    $region4: #{tpu_custom_call.1} parent=1 // pred_region
      _
    $region5: #{tpu_custom_call.1} parent=1 // pred_fallthru
      _
    // Predicated region
    $region6: #{tpu_custom_call.1} parent=1 // pred_check
      _
    $region7: #{tpu_custom_call.1} parent=1 // pred_check_branch
      %14 = sbr.rel (0) target = $region9
    $region8: #{tpu_custom_call.1} parent=1 // pred_region
      _
    $region9: #{tpu_custom_call.1} parent=1 // pred_fallthru
      _
    // Predicated region
    $region10: #{tpu_custom_call.1} parent=1 // pred_check
      _
    $region11: #{tpu_custom_call.1} parent=1 // pred_check_branch
      %16 = sbr.rel (0) target = $region13
    $region12: #{tpu_custom_call.1} parent=1 // pred_region
      _
    $region13: #{tpu_custom_call.1} parent=1 // pred_fallthru
      _
    // Predicated region
    $region14: #{tpu_custom_call.1} parent=1 // pred_check
      _
    $region15: #{tpu_custom_call.1} parent=1 // pred_check_branch
      %18 = sbr.rel (0) target = $region17
    $region16: #{tpu_custom_call.1} parent=1 // pred_region
      _
    $region17: #{tpu_custom_call.1} parent=1 // pred_fallthru
      _
    %s19 = sld [smem:[#allocation2]]
    %v20 = vld [vmem:[%s3] sm:$0xf]
    %v21 = vld [vmem:[%s1] sm:$0x1]
    %v22 = vstv %s19
    %v23 = vmul.f32 %v22, %v20
    %v24 = vtanh.pop %v23
    %v26 = vlaneseq
    %v27 = vshrl.u32 %v26, 7
    %v28 = vsub.s32 0, %v27
    %v29 = vrot.slane %v21, %v28
    %v31 = vmul.f32 %v29, %v24
    %v32 = vld [vmem:[%s2] sm:$0x1]
    %v34 = vlaneseq
    %v35 = vshrl.u32 %v34, 7
    %v36 = vsub.s32 0, %v35
    %v37 = vrot.slane %v32, %v36
    %v39 = vadd.f32 %v31, %v37
    %40 = vst [vmem:[#allocation3] sm:$0xf] %v39
    // Predicated region
    $region18: #{tpu_custom_call.1} parent=1 // pred_check
      _
    $region19: #{tpu_custom_call.1} parent=1 // pred_check_branch
      %42 = sbr.rel (0) target = $region21
    $region20: #{tpu_custom_call.1} parent=1 // pred_region
      %s44 = ssub.s32 64, 64
      %45 = vsyncadd [#allocation4], %s44
      %s47 = sshll.u32 [#allocation3], 4
      %s48 = int_to_ptr.vmem [resolvable:$true] %s47
      %50 = dma.vmem_to_hbm [thread:$0]  %s48, 64, %s4, [#allocation4]
    $region21: #{tpu_custom_call.1} parent=1 // pred_fallthru
      _
    // Predicated region
    $region22: #{tpu_custom_call.1} parent=1 // pred_check
      _
    $region23: #{tpu_custom_call.1} parent=1 // pred_check_branch
      %52 = sbr.rel (0) target = $region25
    $region24: #{tpu_custom_call.1} parent=1 // pred_region
      %53 = dma.done [#allocation4], 64
    $region25: #{tpu_custom_call.1} parent=1 // pred_fallthru
      _
    %54 = vsyncpa [#allocation4], 1

</llo_original>
